<compile_context>
chip_gen: v6e
topology: v6e:2x2x1
jax: 0.10.0
libtpu: 0.0.40
codegen_flags: <defaults>
</compile_context>

<pallas_src>
import jax
import jax.numpy as jnp
from jax.experimental import pallas as pl
from jax.experimental.pallas import tpu as pltpu


# ---------------------------------------------------------------------------
# Pallas kernel: identity copy (the only lowerable semantics of the abstract
# BaseModel forward / predict passthrough).
# ---------------------------------------------------------------------------
def _identity_kernel(x_ref, o_ref):
    o_ref[...] = x_ref[...]


_SMALL_BYTES = 1 << 20  # below ~1 MiB, dispatch + grid-step overhead dominates


def _chip_block_defaults():
    """(target_block_bytes, vmem_limit_bytes) tuned per TPU generation."""
    try:
        kind = jax.devices()[0].device_kind.lower()
    except Exception:  # pragma: no cover - defensive; unknown backend
        kind = ""
    if "v5 lite" in kind or "v5e" in kind or "v5lite" in kind:
        # v5e: ~0.8 TB/s HBM; 2 MiB tiles already sit near the roofline.
        return 2 << 20, 32 << 20
    if "v7" in kind:
        # v7x: 64 MiB physical VMEM -> 4 MiB blocks (2 in + 2 out = 16 MiB
        # resident) and an explicit 48 MiB cap to leave compiler headroom.
        return 4 << 20, 48 << 20
    if "v6" in kind:
        # v6e: 128 MiB VMEM, ~1.4 TB/s HBM -> bigger tiles amortize the
        # ~0.35 us per-grid-step overhead (512/1024-row tiles ~85-86% of BW).
        return 8 << 20, 64 << 20
    # Unknown chip: conservative sizes that fit every generation.
    return 4 << 20, 48 << 20


def _choose_lane_width(total):
    """Lane-dense last dim (multiple of 128) with NO padding; None if ragged."""
    for lane in (1024, 512, 256, 128):  # 512-1024 preferred (v5e single vst slot)
        if total % lane == 0:
            return lane
    return None


def _pick_tile_rows(rows, lane, itemsize, target_block_bytes, native):
    """Rows per block: dtype-native sublane aligned; divides `rows` if possible."""
    if rows * lane * itemsize <= target_block_bytes:
        return rows  # single block == full array dims (always a legal block)
    max_rows = (target_block_bytes // (lane * itemsize)) // native * native
    max_rows = max(native, min(max_rows, rows))
    # Prefer a tile count that divides rows evenly -> no masked edge block.
    t = max_rows
    while t >= native:
        if rows % t == 0:
            return t
        t -= native
    return max_rows  # ragged edge: masked stores on the last block only


def _pallas_identity_copy(x: jax.Array) -> jax.Array:
    """Lane-dense, tiled, double-buffered HBM copy (identity) via Pallas."""
    total = x.size
    lane = _choose_lane_width(total)
    if lane is None:
        # Not 128-aligned: skip the kernel rather than paying jnp.pad + slice
        # (each is a full extra HBM pass).  Identity is exact without it.
        return x

    itemsize = jnp.dtype(x.dtype).itemsize
    rows = total // lane
    native = max(8, 32 // itemsize)  # 8 (f32) / 16 (bf16) / 32 (int8) sublanes
    target_block_bytes, vmem_limit = _chip_block_defaults()
    tile_r = _pick_tile_rows(rows, lane, itemsize, target_block_bytes, native)

    x2d = x.reshape(rows, lane)  # contiguous flatten: layout no-op

    out2d = pl.pallas_call(
        _identity_kernel,
        out_shape=jax.ShapeDtypeStruct((rows, lane), x.dtype),
        grid_spec=pl.GridSpec(
            grid=(pl.cdiv(rows, tile_r),),
            in_specs=[pl.BlockSpec((tile_r, lane), lambda i: (i, 0))],
            out_specs=pl.BlockSpec((tile_r, lane), lambda i: (i, 0)),
        ),
        compiler_params=pltpu.CompilerParams(
            dimension_semantics=("parallel",),  # megacore sharding where available
            vmem_limit_bytes=vmem_limit,
        ),
        # NOTE: input_output_aliases={0: 0} would save the output allocation,
        # but without input donation XLA inserts a defensive copy; omitted.
    )(x2d)

    return out2d.reshape(x.shape)


def base_model_forward(x: jax.Array, *, force_kernel: bool = False) -> jax.Array:
    """Forward for BaseModel: identity passthrough (any rank/dtype).

    The fastest kernel for identity is no kernel: small or 128-unaligned
    tensors return `x` with zero HBM traffic.  Large aligned tensors (or
    force_kernel=True) exercise the lane-dense tiled Pallas copy pipeline.
    """
    nbytes = x.size * jnp.dtype(x.dtype).itemsize
    if not force_kernel and nbytes < _SMALL_BYTES:
        return x
    return _pallas_identity_copy(x)


class BaseModelJAX:
    """JAX/Pallas mirror of openhgnn BaseModel (abstract base class)."""

    def __init__(self):
        # BaseModel.__init__ creates no learnable parameters.
        self.device = ""
        self.loss_fn = None
        self.evaluator = None

    # --- forward path -------------------------------------------------------
    def forward(self, x):
        # In the PyTorch base class this raises NotImplementedError; here we
        # provide the identity passthrough as the degenerate forward.
        return base_model_forward(x)

    def predict(self, data):
        return self.forward(data)

    # --- loss glue (plain JAX, mirrors the PyTorch control flow) -------------
    def set_loss_fn(self, loss_fn):
        self.loss_fn = loss_fn

    def node_classification_loss(self, data_x, label, mask):
        pred = self.forward(data_x)
        if self.loss_fn is None:
            raise ValueError("loss_fn not set")
        pred_flat = pred.reshape(pred.shape[0], -1)
        # TODO(synk): boolean fancy-indexing does not trace under jax.jit
        # (dynamic shapes); replace with a mask-weighted loss for jitted training.
        return self.loss_fn(pred_flat[mask], label[mask])

    def graph_classification_loss(self, batch_x, batch_y):
        pred = self.forward(batch_x)
        if self.loss_fn is None:
            raise ValueError("loss_fn not set")
        return self.loss_fn(pred, batch_y)

    # --- no-op API parity -----------------------------------------------------
    @staticmethod
    def add_args(parser):
        pass

    @staticmethod
    def get_trainer(task, args):
        return None

    def set_device(self, device):
        pass

    def preprocess(self):
        pass

    def trainer(self):
        pass


if __name__ == "__main__":
    key = jax.random.PRNGKey(0)
    # Small NCHW-style input consistent with a generic model input.
    x = jax.random.normal(key, (2, 4, 16, 16), dtype=jnp.float32)

    model = BaseModelJAX()

    # 1) Default forward/predict: identity fast path (no kernel, no HBM traffic).
    out_fast = jax.block_until_ready(model.predict(x))
    assert out_fast.shape == x.shape and out_fast.dtype == x.dtype
    assert bool(jnp.allclose(out_fast, x)), "fast-path identity mismatch"

    # 2) Exercise the Pallas identity-copy kernel once (lane-dense tiled path).
    out_kernel = jax.block_until_ready(base_model_forward(x, force_kernel=True))
    assert out_kernel.shape == x.shape and out_kernel.dtype == x.dtype
    assert bool(jnp.allclose(out_kernel, x)), "kernel identity mismatch"

    print("KERNEL_OK")
</pallas_src>

<mosaic_0001>
module attributes {stable_mosaic.version = 11 : i64} {
  func.func @_identity_kernel(%arg0: i32, %arg1: memref<2x1024xf32, #tpu.memory_space<vmem>>, %arg2: memref<2x1024xf32, #tpu.memory_space<vmem>>) attributes {dimension_semantics = [#tpu.dimension_semantics<parallel>], iteration_bounds = array<i64: 1>, scalar_prefetch = 0 : i64, scratch_operands = 0 : i64, tpu.core_type = #tpu.core_type<tc>, window_params = [{transform_indices = @transform_0, window_bounds = array<i64: 2, 1024>}, {transform_indices = @transform_1, window_bounds = array<i64: 2, 1024>}]} {
    %c0 = arith.constant 0 : index
    %c0_0 = arith.constant 0 : index
    %0 = vector.load %arg1[%c0, %c0_0] : memref<2x1024xf32, #tpu.memory_space<vmem>>, vector<2x1024xf32>
    %c0_1 = arith.constant 0 : index
    %c0_2 = arith.constant 0 : index
    %1 = vector.load %arg2[%c0_1, %c0_2] : memref<2x1024xf32, #tpu.memory_space<vmem>>, vector<2x1024xf32>
    tpu.vector_store %arg2[%c0_1, %c0_2], %0 {strides = array<i32>} : memref<2x1024xf32, #tpu.memory_space<vmem>>, vector<2x1024xf32>,
    return
  }
  func.func @transform_0(%arg0: i32) -> (i32, i32) {
    %c0_i32 = arith.constant 0 : i32
    %c0_i32_0 = arith.constant 0 : i32
    return %arg0, %c0_i32 : i32, i32
  }
  func.func @transform_1(%arg0: i32) -> (i32, i32) {
    %c0_i32 = arith.constant 0 : i32
    %c0_i32_0 = arith.constant 0 : i32
    return %arg0, %c0_i32 : i32, i32
  }
}

</mosaic_0001>

<llo_original>
// kernel: tpu_custom_call.1
$region0: #{tpu_custom_call.1}
  #allocation0 [shape = 'u32[]', space=smem, size = 0x4, offset = 0x4, fixed_abs, tag = 'smem constant byte address 0x4 - core index']
  #allocation1 [shape = 'u32[144,128]{1,0:T(1,128)}', space=vmem, size = 0x12000, scoped, tag = 'internal scratch']
  %s0 = inlined_call_operand.hbm [shape: f32[2,1024], index: 0, kind: input, shape index: {}]
  %s1 = inlined_call_operand.hbm [shape: f32[2,1024], index: 1, kind: output, shape index: {}]
  %s2 = sld [smem:[#allocation0]]
  $region18: #{tpu_custom_call.1} parent=0
    _
  %s4 = ssub.s32 1, %s2
  %s5 = scalar_select 0, %s4, %s2
  $region1: #{tpu_custom_call.1} parent=0
    #allocation2 [shape = 'u8[8192]{0}', space=vmem, size = 0x2000, scoped, tag = 'input window, operand 0, single buffered']
    #allocation3 [shape = 's32[1]{0}', space=sflag, size = 0x4, scoped, tag = 'scoped memory for tpu_custom_call.1']
    #allocation4 [shape = 's32[1]{0}', space=sflag, size = 0x4, scoped, tag = 'scoped memory for tpu_custom_call.1']
    #allocation5 [shape = 'u8[8192]{0}', space=vmem, size = 0x2000, scoped, tag = 'output window, operand 0, single buffered']
    %6 = vsyncpa [#allocation3], 0
    %7 = vsyncpa [#allocation4], 0
    // Predicated region
    $region2: #{tpu_custom_call.1} parent=1 // pred_check
      _
    $region3: #{tpu_custom_call.1} parent=1 // pred_check_branch
      %9 = sbr.rel (0) target = $region5
    $region4: #{tpu_custom_call.1} parent=1 // pred_region
      %s11 = ssub.s32 256, 256
      %12 = vsyncadd [#allocation3], %s11
      %s14 = sshll.u32 [#allocation2], 4
      %s15 = int_to_ptr.vmem [resolvable:$true] %s14
      %17 = dma.hbm_to_vmem [thread:$0]  %s0, 256, %s15, [#allocation3]
    $region5: #{tpu_custom_call.1} parent=1 // pred_fallthru
      _
    // Predicated region
    $region6: #{tpu_custom_call.1} parent=1 // pred_check
      _
    $region7: #{tpu_custom_call.1} parent=1 // pred_check_branch
      %19 = sbr.rel (0) target = $region9
    $region8: #{tpu_custom_call.1} parent=1 // pred_region
      %20 = dma.done [#allocation3], 256
    $region9: #{tpu_custom_call.1} parent=1 // pred_fallthru
      _
    %v21 = vld [vmem:[#allocation2] sm:$0xff]
    %v22 = vld [vmem:[#allocation2 + $0x8] sm:$0xff]
    %23 = vst [vmem:[#allocation5] sm:$0xff] %v21
    %24 = vst [vmem:[#allocation5 + $0x8] sm:$0xff] %v22
    // Predicated region
    $region10: #{tpu_custom_call.1} parent=1 // pred_check
      _
    $region11: #{tpu_custom_call.1} parent=1 // pred_check_branch
      %26 = sbr.rel (0) target = $region13
    $region12: #{tpu_custom_call.1} parent=1 // pred_region
      %s28 = ssub.s32 256, 256
      %29 = vsyncadd [#allocation4], %s28
      %s31 = sshll.u32 [#allocation5], 4
      %s32 = int_to_ptr.vmem [resolvable:$true] %s31
      %34 = dma.vmem_to_hbm [thread:$0]  %s32, 256, %s1, [#allocation4]
    $region13: #{tpu_custom_call.1} parent=1 // pred_fallthru
      _
    // Predicated region
    $region14: #{tpu_custom_call.1} parent=1 // pred_check
      _
    $region15: #{tpu_custom_call.1} parent=1 // pred_check_branch
      %36 = sbr.rel (0) target = $region17
    $region16: #{tpu_custom_call.1} parent=1 // pred_region
      %37 = dma.done [#allocation4], 256
    $region17: #{tpu_custom_call.1} parent=1 // pred_fallthru
      _
    %38 = vsyncpa [#allocation3], 1
    %39 = vsyncpa [#allocation4], 1

</llo_original>
